<compile_context>
chip_gen: v7x
topology: tpu7x:2x2x1
jax: 0.10.0
libtpu: 0.0.40
codegen_flags: <defaults>
</compile_context>

<pallas_src>
import jax
import jax.numpy as jnp
from jax.experimental import pallas as pl
from jax.experimental.pallas import tpu as pltpu

EPS = 1e-5        # PyTorch BatchNorm1d default eps
N_PAD = 128       # lane-dense padded width for the 1-wide output layer


def _round_up(x, m):
    return (x + m - 1) // m * m


# ---------------------------------------------------------------------------
# Fused MLP kernel: (x @ W1 + b1).relu @ W2' + b2').relu @ W3' + b3'
# (BN affines already folded into W2'/b2' and W3'/b3')
# ---------------------------------------------------------------------------
def _fused_mlp_kernel(x_ref, w1_ref, b1_ref, w2_ref, b2_ref, w3_ref, b3_ref, o_ref):
    # x: (tm, 17) f32 ; w*: bf16 ; b*: (1, N) f32 ; o: (tm, 128) f32
    x = x_ref[...].astype(jnp.bfloat16)
    h = jnp.dot(x, w1_ref[...], preferred_element_type=jnp.float32) + b1_ref[...]
    h = jnp.maximum(h, 0.0)
    h = jnp.dot(h.astype(jnp.bfloat16), w2_ref[...],
                preferred_element_type=jnp.float32) + b2_ref[...]
    h = jnp.maximum(h, 0.0)
    o = jnp.dot(h.astype(jnp.bfloat16), w3_ref[...],
                preferred_element_type=jnp.float32) + b3_ref[...]
    o_ref[...] = o.astype(o_ref.dtype)


def fused_mlp(x, w1, b1, w2, b2, w3, b3):
    M, K = x.shape
    H1 = w1.shape[1]
    H2 = w2.shape[1]
    NP = w3.shape[1]
    tm = min(512, _round_up(M, 8))
    grid = (pl.cdiv(M, tm),)  # partial trailing block: OOB rows masked on store
    return pl.pallas_call(
        _fused_mlp_kernel,
        out_shape=jax.ShapeDtypeStruct((M, NP), jnp.float32),
        grid=grid,
        in_specs=[
            pl.BlockSpec((tm, K), lambda i: (i, 0)),
            pl.BlockSpec((K, H1), lambda i: (0, 0)),
            pl.BlockSpec((1, H1), lambda i: (0, 0)),
            pl.BlockSpec((H1, H2), lambda i: (0, 0)),
            pl.BlockSpec((1, H2), lambda i: (0, 0)),
            pl.BlockSpec((H2, NP), lambda i: (0, 0)),
            pl.BlockSpec((1, NP), lambda i: (0, 0)),
        ],
        out_specs=pl.BlockSpec((tm, NP), lambda i: (i, 0)),
        compiler_params=pltpu.CompilerParams(dimension_semantics=("parallel",)),
    )(x, w1, b1, w2, b2, w3, b3)


# ---------------------------------------------------------------------------
# Parameters (PyTorch-style init) and one-time preparation (fold / transpose / bf16)
# ---------------------------------------------------------------------------
def init_params(key=jax.random.PRNGKey(42)):
    ks = jax.random.split(key, 6)

    def u(k, shape, fan_in):
        bound = 1.0 / jnp.sqrt(jnp.float32(fan_in))
        return jax.random.uniform(k, shape, jnp.float32, -bound, bound)

    return dict(
        # torch Linear layout: weight (out_features, in_features), bias (out_features,)
        w1=u(ks[0], (64, 17), 17), b1=u(ks[1], (64,), 17),
        w2=u(ks[2], (64, 64), 64), b2=u(ks[3], (64,), 64),
        w3=u(ks[4], (1, 64), 64),  b3=u(ks[5], (1,), 64),
        # BatchNorm1d affine + running stats (eval mode)
        bn1_gamma=jnp.ones((64,), jnp.float32), bn1_beta=jnp.zeros((64,), jnp.float32),
        bn1_mean=jnp.zeros((64,), jnp.float32), bn1_var=jnp.ones((64,), jnp.float32),
        bn2_gamma=jnp.ones((64,), jnp.float32), bn2_beta=jnp.zeros((64,), jnp.float32),
        bn2_mean=jnp.zeros((64,), jnp.float32), bn2_var=jnp.ones((64,), jnp.float32),
    )


def prepare_params(p):
    """One-time transform: transpose Linear weights to (in, out), fold each BatchNorm
    affine (y = x*s + t) into the following Linear, zero-pad the 1-wide output layer
    to N_PAD lanes, and cast matmul weights to bf16 (biases stay f32)."""
    w1 = p["w1"].T                                   # (17, 64)
    b1 = p["b1"]
    s1 = p["bn1_gamma"] / jnp.sqrt(p["bn1_var"] + EPS)
    t1 = p["bn1_beta"] - p["bn1_mean"] * s1
    w2 = p["w2"].T * s1[:, None]                     # fold BN1 into layer_2: (64, 64)
    b2 = p["b2"] + t1 @ p["w2"].T
    s2 = p["bn2_gamma"] / jnp.sqrt(p["bn2_var"] + EPS)
    t2 = p["bn2_beta"] - p["bn2_mean"] * s2
    w3 = p["w3"].T * s2[:, None]                     # fold BN2 into layer_out: (64, 1)
    b3 = p["b3"] + t2 @ p["w3"].T
    w3 = jnp.pad(w3, ((0, 0), (0, N_PAD - w3.shape[1])))   # lane-dense output
    b3 = jnp.pad(b3, (0, N_PAD - b3.shape[0]))
    return dict(
        w1=w1.astype(jnp.bfloat16), b1=b1.reshape(1, -1),
        w2=w2.astype(jnp.bfloat16), b2=b2.reshape(1, -1),
        w3=w3.astype(jnp.bfloat16), b3=b3.reshape(1, -1),
    )


def binary_classification_forward(prepared, inputs):
    # Eval-mode forward: Dropout(p=0.1) is the identity, BatchNorm1d uses running stats
    # (already folded into the weights by prepare_params).
    # TODO(synk): training-mode batch-statistics BatchNorm and stochastic dropout are
    # not implemented in this inference kernel.
    out = fused_mlp(inputs,
                    prepared["w1"], prepared["b1"],
                    prepared["w2"], prepared["b2"],
                    prepared["w3"], prepared["b3"])
    return out[:, :1]                                # un-pad the 128-wide output


if __name__ == "__main__":
    params = init_params()
    prepared = prepare_params(params)
    x = jax.random.normal(jax.random.PRNGKey(0), (8, 17), jnp.float32)
    out = jax.jit(binary_classification_forward)(prepared, x)
    out = jax.block_until_ready(out)
    assert out.shape == (8, 1) and out.dtype == jnp.float32
    assert bool(jnp.all(jnp.isfinite(out)))
    print("KERNEL_OK")
</pallas_src>

<mosaic_0001>
module attributes {stable_mosaic.version = 11 : i64} {
  func.func @_fused_mlp_kernel(%arg0: i32, %arg1: memref<8x17xf32, #tpu.memory_space<vmem>>, %arg2: memref<17x64xbf16, #tpu.memory_space<vmem>>, %arg3: memref<1x64xf32, #tpu.memory_space<vmem>>, %arg4: memref<64x64xbf16, #tpu.memory_space<vmem>>, %arg5: memref<1x64xf32, #tpu.memory_space<vmem>>, %arg6: memref<64x128xbf16, #tpu.memory_space<vmem>>, %arg7: memref<1x128xf32, #tpu.memory_space<vmem>>, %arg8: memref<8x128xf32, #tpu.memory_space<vmem>>) attributes {dimension_semantics = [#tpu.dimension_semantics<parallel>], iteration_bounds = array<i64: 1>, scalar_prefetch = 0 : i64, scratch_operands = 0 : i64, tpu.core_type = #tpu.core_type<tc>, window_params = [{transform_indices = @transform_0, window_bounds = array<i64: 8, 17>}, {pipeline_mode = #tpu.pipeline_mode<synchronous>, transform_indices = @transform_1, window_bounds = array<i64: 17, 64>}, {pipeline_mode = #tpu.pipeline_mode<synchronous>, transform_indices = @transform_2, window_bounds = array<i64: 1, 64>}, {pipeline_mode = #tpu.pipeline_mode<synchronous>, transform_indices = @transform_3, window_bounds = array<i64: 64, 64>}, {pipeline_mode = #tpu.pipeline_mode<synchronous>, transform_indices = @transform_4, window_bounds = array<i64: 1, 64>}, {pipeline_mode = #tpu.pipeline_mode<synchronous>, transform_indices = @transform_5, window_bounds = array<i64: 64, 128>}, {pipeline_mode = #tpu.pipeline_mode<synchronous>, transform_indices = @transform_6, window_bounds = array<i64: 1, 128>}, {transform_indices = @transform_7, window_bounds = array<i64: 8, 128>}]} {
    %c0 = arith.constant 0 : index
    %c0_0 = arith.constant 0 : index
    %0 = vector.load %arg1[%c0, %c0_0] : memref<8x17xf32, #tpu.memory_space<vmem>>, vector<8x17xf32>
    %1 = arith.truncf %0 : vector<8x17xf32> to vector<8x17xbf16>
    %c0_1 = arith.constant 0 : index
    %c0_2 = arith.constant 0 : index
    %2 = vector.load %arg2[%c0_1, %c0_2] : memref<17x64xbf16, #tpu.memory_space<vmem>>, vector<17x64xbf16>
    %cst = arith.constant dense<0.000000e+00> : vector<8x64xf32>
    %3 = tpu.matmul %1, %2, %cst {dimension_numbers = #tpu.dot_dimension_numbers<[1], [0], [0], [1], [0, 0, 1, 1], [], []>} : vector<8x17xbf16>, vector<17x64xbf16>, vector<8x64xf32> -> vector<8x64xf32>
    %c0_3 = arith.constant 0 : index
    %c0_4 = arith.constant 0 : index
    %4 = vector.load %arg3[%c0_3, %c0_4] : memref<1x64xf32, #tpu.memory_space<vmem>>, vector<1x64xf32>
    %5 = vector.broadcast %4 : vector<1x64xf32> to vector<8x64xf32>
    %6 = arith.addf %3, %5 : vector<8x64xf32>
    %cst_5 = arith.constant 0.000000e+00 : f32
    %7 = vector.broadcast %cst_5 : f32 to vector<8x64xf32>
    %8 = arith.maximumf %6, %7 : vector<8x64xf32>
    %9 = arith.truncf %8 : vector<8x64xf32> to vector<8x64xbf16>
    %c0_6 = arith.constant 0 : index
    %c0_7 = arith.constant 0 : index
    %10 = vector.load %arg4[%c0_6, %c0_7] : memref<64x64xbf16, #tpu.memory_space<vmem>>, vector<64x64xbf16>
    %cst_8 = arith.constant dense<0.000000e+00> : vector<8x64xf32>
    %11 = tpu.matmul %9, %10, %cst_8 {dimension_numbers = #tpu.dot_dimension_numbers<[1], [0], [0], [1], [0, 0, 1, 1], [], []>} : vector<8x64xbf16>, vector<64x64xbf16>, vector<8x64xf32> -> vector<8x64xf32>
    %c0_9 = arith.constant 0 : index
    %c0_10 = arith.constant 0 : index
    %12 = vector.load %arg5[%c0_9, %c0_10] : memref<1x64xf32, #tpu.memory_space<vmem>>, vector<1x64xf32>
    %13 = vector.broadcast %12 : vector<1x64xf32> to vector<8x64xf32>
    %14 = arith.addf %11, %13 : vector<8x64xf32>
    %cst_11 = arith.constant 0.000000e+00 : f32
    %15 = vector.broadcast %cst_11 : f32 to vector<8x64xf32>
    %16 = arith.maximumf %14, %15 : vector<8x64xf32>
    %17 = arith.truncf %16 : vector<8x64xf32> to vector<8x64xbf16>
    %c0_12 = arith.constant 0 : index
    %c0_13 = arith.constant 0 : index
    %18 = vector.load %arg6[%c0_12, %c0_13] : memref<64x128xbf16, #tpu.memory_space<vmem>>, vector<64x128xbf16>
    %cst_14 = arith.constant dense<0.000000e+00> : vector<8x128xf32>
    %19 = tpu.matmul %17, %18, %cst_14 {dimension_numbers = #tpu.dot_dimension_numbers<[1], [0], [0], [1], [0, 0, 1, 1], [], []>} : vector<8x64xbf16>, vector<64x128xbf16>, vector<8x128xf32> -> vector<8x128xf32>
    %c0_15 = arith.constant 0 : index
    %c0_16 = arith.constant 0 : index
    %20 = vector.load %arg7[%c0_15, %c0_16] : memref<1x128xf32, #tpu.memory_space<vmem>>, vector<1x128xf32>
    %21 = vector.broadcast %20 : vector<1x128xf32> to vector<8x128xf32>
    %22 = arith.addf %19, %21 : vector<8x128xf32>
    %c0_17 = arith.constant 0 : index
    %c0_18 = arith.constant 0 : index
    %23 = vector.load %arg8[%c0_17, %c0_18] : memref<8x128xf32, #tpu.memory_space<vmem>>, vector<8x128xf32>
    tpu.vector_store %arg8[%c0_17, %c0_18], %22 {strides = array<i32>} : memref<8x128xf32, #tpu.memory_space<vmem>>, vector<8x128xf32>,
    return
  }
  func.func @transform_0(%arg0: i32) -> (i32, i32) {
    %c0_i32 = arith.constant 0 : i32
    %c0_i32_0 = arith.constant 0 : i32
    return %arg0, %c0_i32 : i32, i32
  }
  func.func @transform_1(%arg0: i32) -> (i32, i32) {
    %c0_i32 = arith.constant 0 : i32
    %c0_i32_0 = arith.constant 0 : i32
    %c0_i32_1 = arith.constant 0 : i32
    return %c0_i32, %c0_i32_0 : i32, i32
  }
  func.func @transform_2(%arg0: i32) -> (i32, i32) {
    %c0_i32 = arith.constant 0 : i32
    %c0_i32_0 = arith.constant 0 : i32
    %c0_i32_1 = arith.constant 0 : i32
    return %c0_i32, %c0_i32_0 : i32, i32
  }
  func.func @transform_3(%arg0: i32) -> (i32, i32) {
    %c0_i32 = arith.constant 0 : i32
    %c0_i32_0 = arith.constant 0 : i32
    %c0_i32_1 = arith.constant 0 : i32
    return %c0_i32, %c0_i32_0 : i32, i32
  }
  func.func @transform_4(%arg0: i32) -> (i32, i32) {
    %c0_i32 = arith.constant 0 : i32
    %c0_i32_0 = arith.constant 0 : i32
    %c0_i32_1 = arith.constant 0 : i32
    return %c0_i32, %c0_i32_0 : i32, i32
  }
  func.func @transform_5(%arg0: i32) -> (i32, i32) {
    %c0_i32 = arith.constant 0 : i32
    %c0_i32_0 = arith.constant 0 : i32
    %c0_i32_1 = arith.constant 0 : i32
    return %c0_i32, %c0_i32_0 : i32, i32
  }
  func.func @transform_6(%arg0: i32) -> (i32, i32) {
    %c0_i32 = arith.constant 0 : i32
    %c0_i32_0 = arith.constant 0 : i32
    %c0_i32_1 = arith.constant 0 : i32
    return %c0_i32, %c0_i32_0 : i32, i32
  }
  func.func @transform_7(%arg0: i32) -> (i32, i32) {
    %c0_i32 = arith.constant 0 : i32
    %c0_i32_0 = arith.constant 0 : i32
    return %arg0, %c0_i32 : i32, i32
  }
}

</mosaic_0001>

<llo_original>
// kernel: binary_classification_forward.1
$region0: #{binary_classification_forward.1}
  #allocation0 [shape = 'u32[]', space=smem, size = 0x4, offset = 0x4, fixed_abs, tag = 'smem constant byte address 0x4 - core index']
  #allocation1 [shape = 'u32[144,128]{1,0:T(1,128)}', space=vmem, size = 0x12000, scoped, tag = 'internal scratch']
  %s0 = inlined_call_operand.vmem [shape: f32[8,17], index: 0, kind: input, shape index: {}]
  %s1 = inlined_call_operand.hbm [shape: bf16[17,64], index: 1, kind: input, shape index: {}]
  %s2 = inlined_call_operand.hbm [shape: f32[1,64], index: 2, kind: input, shape index: {}]
  %s3 = inlined_call_operand.hbm [shape: bf16[64,64], index: 3, kind: input, shape index: {}]
  %s4 = inlined_call_operand.vmem [shape: f32[1,64], index: 4, kind: input, shape index: {}]
  %s5 = inlined_call_operand.hbm [shape: bf16[64,128], index: 5, kind: input, shape index: {}]
  %s6 = inlined_call_operand.vmem [shape: f32[1,128], index: 6, kind: input, shape index: {}]
  %s7 = inlined_call_operand.vmem [shape: f32[8,128], index: 7, kind: output, shape index: {}]
  %s8 = sld [smem:[#allocation0]]
  $region54: #{binary_classification_forward.1} parent=0
    _
  %s10 = ssub.s32 1, %s8
  %s11 = scalar_select 0, %s10, %s8
  $region1: #{binary_classification_forward.1} parent=0
    #allocation2 [shape = 'u8[6144]{0}', space=vmem, size = 0x1800, scoped, tag = 'input window, operand 1, single buffered']
    #allocation3 [shape = 's32[1]{0}', space=sflag, size = 0x4, scoped, tag = 'scoped memory for binary_classification_forward.1']
    #allocation4 [shape = 'u8[512]{0}', space=vmem, size = 0x400, scoped, tag = 'input window, operand 2, single buffered']
    #allocation5 [shape = 's32[1]{0}', space=sflag, size = 0x4, scoped, tag = 'scoped memory for binary_classification_forward.1']
    #allocation6 [shape = 'u8[16384]{0}', space=vmem, size = 0x4000, scoped, tag = 'input window, operand 3, single buffered']
    #allocation7 [shape = 'u8[16384]{0}', space=vmem, size = 0x4000, scoped, tag = 'input window, operand 5, single buffered']
    #allocation8 [shape = 's32[1]{0}', space=sflag, size = 0x4, scoped, tag = 'scoped memory for binary_classification_forward.1']
    %12 = vsyncpa [#allocation3], 0
    %13 = vsyncpa [#allocation5], 0
    %14 = vsyncpa [#allocation8], 0
    // Predicated region
    $region2: #{binary_classification_forward.1} parent=1 // pred_check
      _
    $region3: #{binary_classification_forward.1} parent=1 // pred_check_branch
      %16 = sbr.rel (0) target = $region5
    $region4: #{binary_classification_forward.1} parent=1 // pred_region
      _
    $region5: #{binary_classification_forward.1} parent=1 // pred_fallthru
      _
    // Predicated region
    $region6: #{binary_classification_forward.1} parent=1 // pred_check
      _
    $region7: #{binary_classification_forward.1} parent=1 // pred_check_branch
      %18 = sbr.rel (0) target = $region9
    $region8: #{binary_classification_forward.1} parent=1 // pred_region
      %s20 = ssub.s32 192, 192
      %21 = vsyncadd [#allocation3], %s20
      %s22 = sshll.u32 [#allocation2], 4
      %s23 = int_to_ptr.vmem [resolvable:$true] %s22
      %28 = dma.hbm_to_vmem [thread:$0]  %s1, 192, %s23, [#allocation3], 64, 64, 4
    $region9: #{binary_classification_forward.1} parent=1 // pred_fallthru
      _
    // Predicated region
    $region10: #{binary_classification_forward.1} parent=1 // pred_check
      _
    $region11: #{binary_classification_forward.1} parent=1 // pred_check_branch
      %30 = sbr.rel (0) target = $region13
    $region12: #{binary_classification_forward.1} parent=1 // pred_region
      %s32 = ssub.s32 16, 16
      %33 = vsyncadd [#allocation5], %s32
      %s35 = sshll.u32 [#allocation4], 4
      %s36 = int_to_ptr.vmem [resolvable:$true] %s35
      %38 = dma.hbm_to_vmem [thread:$0]  %s2, 16, %s36, [#allocation5]
    $region13: #{binary_classification_forward.1} parent=1 // pred_fallthru
      _
    // Predicated region
    $region14: #{binary_classification_forward.1} parent=1 // pred_check
      _
    $region15: #{binary_classification_forward.1} parent=1 // pred_check_branch
      %40 = sbr.rel (0) target = $region17
    $region16: #{binary_classification_forward.1} parent=1 // pred_region
      %s42 = ssub.s32 512, 512
      %43 = vsyncadd [#allocation5], %s42
      %s44 = sshll.u32 [#allocation6], 4
      %s45 = int_to_ptr.vmem [resolvable:$true] %s44
      %50 = dma.hbm_to_vmem [thread:$0]  %s3, 512, %s45, [#allocation5], 64, 64, 4
    $region17: #{binary_classification_forward.1} parent=1 // pred_fallthru
      _
    // Predicated region
    $region18: #{binary_classification_forward.1} parent=1 // pred_check
      _
    $region19: #{binary_classification_forward.1} parent=1 // pred_check_branch
      %52 = sbr.rel (0) target = $region21
    $region20: #{binary_classification_forward.1} parent=1 // pred_region
      _
    $region21: #{binary_classification_forward.1} parent=1 // pred_fallthru
      _
    // Predicated region
    $region22: #{binary_classification_forward.1} parent=1 // pred_check
      _
    $region23: #{binary_classification_forward.1} parent=1 // pred_check_branch
      %54 = sbr.rel (0) target = $region25
    $region24: #{binary_classification_forward.1} parent=1 // pred_region
      %s56 = ssub.s32 512, 512
      %57 = vsyncadd [#allocation8], %s56
      %s58 = sshll.u32 [#allocation7], 4
      %s59 = int_to_ptr.vmem [resolvable:$true] %s58
      %64 = dma.hbm_to_vmem [thread:$0]  %s5, 512, %s59, [#allocation8], 64, 64, 4
    $region25: #{binary_classification_forward.1} parent=1 // pred_fallthru
      _
    // Predicated region
    $region26: #{binary_classification_forward.1} parent=1 // pred_check
      _
    $region27: #{binary_classification_forward.1} parent=1 // pred_check_branch
      %66 = sbr.rel (0) target = $region29
    $region28: #{binary_classification_forward.1} parent=1 // pred_region
      _
    $region29: #{binary_classification_forward.1} parent=1 // pred_fallthru
      _
    // Predicated region
    $region30: #{binary_classification_forward.1} parent=1 // pred_check
      _
    $region31: #{binary_classification_forward.1} parent=1 // pred_check_branch
      %68 = sbr.rel (0) target = $region33
    $region32: #{binary_classification_forward.1} parent=1 // pred_region
      %69 = dma.done [#allocation3], 192
    $region33: #{binary_classification_forward.1} parent=1 // pred_fallthru
      _
    // Predicated region
    $region34: #{binary_classification_forward.1} parent=1 // pred_check
      _
    $region35: #{binary_classification_forward.1} parent=1 // pred_check_branch
      %71 = sbr.rel (0) target = $region37
    $region36: #{binary_classification_forward.1} parent=1 // pred_region
      %72 = dma.done [#allocation5], 16
    $region37: #{binary_classification_forward.1} parent=1 // pred_fallthru
      _
    // Predicated region
    $region38: #{binary_classification_forward.1} parent=1 // pred_check
      _
    $region39: #{binary_classification_forward.1} parent=1 // pred_check_branch
      %74 = sbr.rel (0) target = $region41
    $region40: #{binary_classification_forward.1} parent=1 // pred_region
      %75 = dma.done [#allocation5], 512
    $region41: #{binary_classification_forward.1} parent=1 // pred_fallthru
      _
    // Predicated region
    $region42: #{binary_classification_forward.1} parent=1 // pred_check
      _
    $region43: #{binary_classification_forward.1} parent=1 // pred_check_branch
      %77 = sbr.rel (0) target = $region45
    $region44: #{binary_classification_forward.1} parent=1 // pred_region
      %78 = dma.done [#allocation8], 512
    $region45: #{binary_classification_forward.1} parent=1 // pred_fallthru
      _
    %v80 = vld [vmem:[%s0] sm:$0xff]
    %v81 = vpack.c.bf16 %v80, %v80
    %v82 = vld [vmem:[#allocation2] sm:$0xf]
    %v83 = vld [vmem:[#allocation2 + $0x4] sm:$0xf]
    %v84 = vld [vmem:[#allocation2 + $0x8] sm:$0x1]
    %v85 = vld [vmem:[#allocation4] sm:$0x1]
    %v87 = vlaneseq
    %v88 = vshrl.u32 %v87, 7
    %v89 = vsub.s32 0, %v88
    %v90 = vrot.slane %v85, %v89
    %v95 = vunpack.c.l.b16 %v82
    %v96 = vunpack.c.l.b16 %v83
    %v97 = vunpack.c.l.b16 %v84
    %v98 = vpack.c.b16 %v96, %v95
    %v99 = vpack.c.b16 %v97, %v97
    %vm101 = vcmask 138240
    %v103 = vsel %vm101, %v81, 0
    %vm105 = vcmask 1040384
    %v106 = vsel 0, 4294967295, 65535
    %v107 = vsel %vm105, %v106, 0
    %v109 = vand.u32 %v99, %v107
    %111 = vmatprep.subr.bf16.mxu0 0
    %112 = vmatpush1.bf16.msra.mxu0 %v98
    %113 = vmatprep.subr.bf16.mxu0 0
    %114 = vmatpush1.bf16.msra.mxu0 %v109
    %115 = vmatprep.subr.bf16.mxu0 0
    %116 = vmatpush1.bf16.msra.mxu0 0
    %117 = vmatprep.subr.bf16.mxu0 0
    %118 = vmatpush1.bf16.msra.mxu0 0
    %119 = vmatprep.subr.bf16.mxu0 0
    %120 = vmatpush1.bf16.msra.mxu0 0
    %121 = vmatprep.subr.bf16.mxu0 0
    %122 = vmatpush1.bf16.msra.mxu0 0
    %123 = vmatprep.subr.bf16.mxu0 0
    %124 = vmatpush1.bf16.msra.mxu0 0
    %125 = vmatprep.subr.bf16.mxu0 0
    %126 = vmatpush1.bf16.msra.mxu0 0
    %127 = vmatprep.subr.bf16.mxu0 0
    %128 = vmatpush1.bf16.msra.mxu0 0
    %129 = vmatprep.subr.bf16.mxu0 0
    %130 = vmatpush1.bf16.msra.mxu0 0
    %131 = vmatprep.subr.bf16.mxu0 0
    %132 = vmatpush1.bf16.msra.mxu0 0
    %133 = vmatprep.subr.bf16.mxu0 0
    %134 = vmatpush1.bf16.msra.mxu0 0
    %135 = vmatprep.subr.bf16.mxu0 0
    %136 = vmatpush1.bf16.msra.mxu0 0
    %137 = vmatprep.subr.bf16.mxu0 0
    %138 = vmatpush1.bf16.msra.mxu0 0
    %139 = vmatprep.subr.bf16.mxu0 0
    %140 = vmatpush1.bf16.msra.mxu0 0
    %141 = vmatprep.subr.bf16.mxu0 0
    %142 = vmatpush1.bf16.msra.mxu0 0
    %143 = vmatprep.mubr.bf16.mxu0 0
    %144 = vmatmul.mubr.bf16.gmra.mrb[0].mxu0 %v103
    %v145 = vpop.f32.mrb[0].mxu0
    %v146 = vadd.f32 %v90, %v145
    %v147 = vpop.f32.mrb[0].mxu0
    %v148 = vpop.f32.mrb[0].mxu0
    %v149 = vpop.f32.mrb[0].mxu0
    %150 = vdwg.mxu0
    %v151 = vmax.f32 %v146, 0.0
    %v152 = vpack.c.bf16 %v151, %v151
    %v153 = vld [vmem:[#allocation6] sm:$0xf]
    %v154 = vld [vmem:[#allocation6 + $0x4] sm:$0xf]
    %v155 = vld [vmem:[#allocation6 + $0x8] sm:$0xf]
    %v156 = vld [vmem:[#allocation6 + $0xc] sm:$0xf]
    %v157 = vld [vmem:[#allocation6 + $0x10] sm:$0xf]
    %v158 = vld [vmem:[#allocation6 + $0x14] sm:$0xf]
    %v159 = vld [vmem:[#allocation6 + $0x18] sm:$0xf]
    %v160 = vld [vmem:[#allocation6 + $0x1c] sm:$0xf]
    %v161 = vld [vmem:[%s4] sm:$0x1]
    %v163 = vlaneseq
    %v164 = vshrl.u32 %v163, 7
    %v165 = vsub.s32 0, %v164
    %v166 = vrot.slane %v161, %v165
    %v176 = vunpack.c.l.b16 %v153
    %v177 = vunpack.c.l.b16 %v154
    %v178 = vunpack.c.l.b16 %v155
    %v179 = vunpack.c.l.b16 %v156
    %v180 = vunpack.c.l.b16 %v157
    %v181 = vunpack.c.l.b16 %v158
    %v182 = vunpack.c.l.b16 %v159
    %v183 = vunpack.c.l.b16 %v160
    %v184 = vpack.c.b16 %v177, %v176
    %v185 = vpack.c.b16 %v179, %v178
    %v186 = vpack.c.b16 %v181, %v180
    %v187 = vpack.c.b16 %v183, %v182
    %vm192 = vcmask 523264
    %v194 = vsel %vm192, %v152, 0
    %196 = vmatprep.subr.bf16.mxu0 0
    %197 = vmatpush1.bf16.msra.mxu0 %v184
    %198 = vmatprep.subr.bf16.mxu0 0
    %199 = vmatpush1.bf16.msra.mxu0 %v185
    %200 = vmatprep.subr.bf16.mxu0 0
    %201 = vmatpush1.bf16.msra.mxu0 %v186
    %202 = vmatprep.subr.bf16.mxu0 0
    %203 = vmatpush1.bf16.msra.mxu0 %v187
    %204 = vmatprep.subr.bf16.mxu0 0
    %205 = vmatpush1.bf16.msra.mxu0 0
    %206 = vmatprep.subr.bf16.mxu0 0
    %207 = vmatpush1.bf16.msra.mxu0 0
    %208 = vmatprep.subr.bf16.mxu0 0
    %209 = vmatpush1.bf16.msra.mxu0 0
    %210 = vmatprep.subr.bf16.mxu0 0
    %211 = vmatpush1.bf16.msra.mxu0 0
    %212 = vmatprep.subr.bf16.mxu0 0
    %213 = vmatpush1.bf16.msra.mxu0 0
    %214 = vmatprep.subr.bf16.mxu0 0
    %215 = vmatpush1.bf16.msra.mxu0 0
    %216 = vmatprep.subr.bf16.mxu0 0
    %217 = vmatpush1.bf16.msra.mxu0 0
    %218 = vmatprep.subr.bf16.mxu0 0
    %219 = vmatpush1.bf16.msra.mxu0 0
    %220 = vmatprep.subr.bf16.mxu0 0
    %221 = vmatpush1.bf16.msra.mxu0 0
    %222 = vmatprep.subr.bf16.mxu0 0
    %223 = vmatpush1.bf16.msra.mxu0 0
    %224 = vmatprep.subr.bf16.mxu0 0
    %225 = vmatpush1.bf16.msra.mxu0 0
    %226 = vmatprep.subr.bf16.mxu0 0
    %227 = vmatpush1.bf16.msra.mxu0 0
    %228 = vmatprep.mubr.bf16.mxu0 0
    %229 = vmatmul.mubr.bf16.gmra.mrb[0].mxu0 %v194
    %v230 = vpop.f32.mrb[0].mxu0
    %v231 = vadd.f32 %v166, %v230
    %v232 = vpop.f32.mrb[0].mxu0
    %v233 = vpop.f32.mrb[0].mxu0
    %v234 = vpop.f32.mrb[0].mxu0
    %235 = vdwg.mxu0
    %v236 = vmax.f32 %v231, 0.0
    %v237 = vpack.c.bf16 %v236, %v236
    %v238 = vld [vmem:[#allocation7] sm:$0xf]
    %v239 = vld [vmem:[#allocation7 + $0x4] sm:$0xf]
    %v240 = vld [vmem:[#allocation7 + $0x8] sm:$0xf]
    %v241 = vld [vmem:[#allocation7 + $0xc] sm:$0xf]
    %v242 = vld [vmem:[#allocation7 + $0x10] sm:$0xf]
    %v243 = vld [vmem:[#allocation7 + $0x14] sm:$0xf]
    %v244 = vld [vmem:[#allocation7 + $0x18] sm:$0xf]
    %v245 = vld [vmem:[#allocation7 + $0x1c] sm:$0xf]
    %v246 = vld [vmem:[%s6] sm:$0x1]
    %v248 = vlaneseq
    %v249 = vshrl.u32 %v248, 7
    %v250 = vsub.s32 0, %v249
    %v251 = vrot.slane %v246, %v250
    %v261 = vunpack.c.l.b16 %v238
    %v262 = vunpack.c.l.b16 %v239
    %v263 = vunpack.c.l.b16 %v240
    %v264 = vunpack.c.l.b16 %v241
    %v265 = vunpack.c.l.b16 %v242
    %v266 = vunpack.c.l.b16 %v243
    %v267 = vunpack.c.l.b16 %v244
    %v268 = vunpack.c.l.b16 %v245
    %v269 = vpack.c.b16 %v262, %v261
    %v270 = vpack.c.b16 %v264, %v263
    %v271 = vpack.c.b16 %v266, %v265
    %v272 = vpack.c.b16 %v268, %v267
    %v278 = vsel %vm192, %v237, 0
    %280 = vmatprep.subr.bf16.mxu0 0
    %281 = vmatpush1.bf16.msra.mxu0 %v269
    %282 = vmatprep.subr.bf16.mxu0 0
    %283 = vmatpush1.bf16.msra.mxu0 %v270
    %284 = vmatprep.subr.bf16.mxu0 0
    %285 = vmatpush1.bf16.msra.mxu0 %v271
    %286 = vmatprep.subr.bf16.mxu0 0
    %287 = vmatpush1.bf16.msra.mxu0 %v272
    %288 = vmatprep.subr.bf16.mxu0 0
    %289 = vmatpush1.bf16.msra.mxu0 0
    %290 = vmatprep.subr.bf16.mxu0 0
    %291 = vmatpush1.bf16.msra.mxu0 0
    %292 = vmatprep.subr.bf16.mxu0 0
    %293 = vmatpush1.bf16.msra.mxu0 0
    %294 = vmatprep.subr.bf16.mxu0 0
    %295 = vmatpush1.bf16.msra.mxu0 0
    %296 = vmatprep.subr.bf16.mxu0 0
    %297 = vmatpush1.bf16.msra.mxu0 0
    %298 = vmatprep.subr.bf16.mxu0 0
    %299 = vmatpush1.bf16.msra.mxu0 0
    %300 = vmatprep.subr.bf16.mxu0 0
    %301 = vmatpush1.bf16.msra.mxu0 0
    %302 = vmatprep.subr.bf16.mxu0 0
    %303 = vmatpush1.bf16.msra.mxu0 0
    %304 = vmatprep.subr.bf16.mxu0 0
    %305 = vmatpush1.bf16.msra.mxu0 0
    %306 = vmatprep.subr.bf16.mxu0 0
    %307 = vmatpush1.bf16.msra.mxu0 0
    %308 = vmatprep.subr.bf16.mxu0 0
    %309 = vmatpush1.bf16.msra.mxu0 0
    %310 = vmatprep.subr.bf16.mxu0 0
    %311 = vmatpush1.bf16.msra.mxu0 0
    %312 = vmatprep.mubr.bf16.mxu0 0
    %313 = vmatmul.mubr.bf16.gmra.mrb[0].mxu0 %v278
    %v314 = vpop.f32.mrb[0].mxu0
    %v315 = vadd.f32 %v251, %v314
    %v316 = vpop.f32.mrb[0].mxu0
    %v317 = vpop.f32.mrb[0].mxu0
    %v318 = vpop.f32.mrb[0].mxu0
    %319 = vdwg.mxu0
    %320 = vst [vmem:[%s7] sm:$0xff] %v315
    // Predicated region
    $region46: #{binary_classification_forward.1} parent=1 // pred_check
      _
    $region47: #{binary_classification_forward.1} parent=1 // pred_check_branch
      %322 = sbr.rel (0) target = $region49
    $region48: #{binary_classification_forward.1} parent=1 // pred_region
      _
    $region49: #{binary_classification_forward.1} parent=1 // pred_fallthru
      _
    // Predicated region
    $region50: #{binary_classification_forward.1} parent=1 // pred_check
      _
    $region51: #{binary_classification_forward.1} parent=1 // pred_check_branch
      %324 = sbr.rel (0) target = $region53
    $region52: #{binary_classification_forward.1} parent=1 // pred_region
      _
    $region53: #{binary_classification_forward.1} parent=1 // pred_fallthru
      _
    %325 = vsyncpa [#allocation3], 1
    %326 = vsyncpa [#allocation5], 1
    %327 = vsyncpa [#allocation8], 1

</llo_original>
